<compile_context>
chip_gen: v7x
topology: tpu7x:2x2x1
jax: 0.10.0
libtpu: 0.0.40
codegen_flags: <defaults>
</compile_context>

<pallas_src>
import jax
import jax.numpy as jnp
from jax.experimental import pallas as pl
from jax.experimental.pallas import tpu as pltpu


def _cdiv(a, b):
    return (a + b - 1) // b


def _round_up(x, m):
    return _cdiv(x, m) * m


def _clip_linf_kernel(budget_ref, vt_ref, ori_ref, out_ref):
    """Clip one (Bt, 3, Kt) tile of vertices to a per-point l2 budget.

    budget_ref: (1,) SMEM scalar.
    vt_ref / ori_ref / out_ref: (Bt, 3, Kt) VMEM tiles.
    """
    budget = budget_ref[0]
    vt = vt_ref[...]
    ori = ori_ref[...]
    diff = vt - ori                                        # VPU, dense lanes

    # Channel reduction over axis=1 (sublane axis) -> XLU, which is otherwise
    # idle in this kernel; frees the VALU slots.
    sumsq = jnp.sum(diff * diff, axis=1, keepdims=True)    # (Bt, 1, Kt)

    # Exactly the reference math: budget / (||diff|| + 1e-9), clamped at 1.
    norm = jnp.sqrt(sumsq)                                 # EUP
    scale = jnp.minimum(budget / (norm + 1e-9), 1.0)       # EUP recip + VPU

    # Broadcast scale over the channel axis (== scale_factor[:, None] in torch).
    out_ref[...] = ori + diff * scale


# Bt * Kt element budget per block (f32): 3 arrays x 2 pipeline buffers of the
# sublane-padded (Bt, 8, Kt) tiles stay ~<=12 MiB -> fits v5e's 16 MiB scoped
# VMEM default (v6e/v7x default 32 MiB have extra headroom).
_BLOCK_ELEMS = 65536


def _choose_tiles(B, K):
    """Pick (Bt, Kt) block sizes. No input padding: trailing blocks are partial."""
    # Aim for up to 8 batch rows per block; give the rest of the budget to Kt
    # so lane (fast-axis) DMAs stay large even when B == 1.
    bt_goal = max(1, min(B, 8))
    kt_cap = max(128, (_BLOCK_ELEMS // bt_goal) // 128 * 128)

    n_k = max(1, _cdiv(_round_up(K, 128), kt_cap))
    # Single K block -> use the exact K (allowed: equals the full array dim).
    # Multiple K blocks -> lane-dense 128-multiples, balanced across blocks
    # (tail block is partial; Pallas masks its writeback).
    Kt = K if n_k == 1 else _round_up(_cdiv(K, n_k), 128)

    Bt = max(1, min(B, _BLOCK_ELEMS // max(Kt, 1)))
    Bt = _cdiv(B, _cdiv(B, Bt))  # balance batch blocks

    # v7x has 2 TensorCores sharing 3.2 TB/s of HBM: make sure the grid has at
    # least 2 blocks to shard whenever the problem is big enough.
    if _cdiv(B, Bt) * _cdiv(K, Kt) < 2:
        if B >= 2:
            Bt = _cdiv(B, 2)
        elif K >= 256:
            Kt = _round_up(_cdiv(K, 2), 128)
    return Bt, Kt


def clip_mesh_linf(vt, ori_vt, budget, *, donate_vt=False):
    """Pallas ClipMeshv_Linf forward.

    vt, ori_vt: float [B, 3, K]. budget: python float or traced scalar.
    Returns clipped vt with the same shape/dtype.
    """
    assert vt.shape == ori_vt.shape and vt.ndim == 3 and vt.shape[1] == 3
    B, C, K = vt.shape
    Bt, Kt = _choose_tiles(B, K)
    grid = (_cdiv(B, Bt), _cdiv(K, Kt))

    # Budget as an SMEM scalar (no recompile per budget value, traceable).
    budget_arr = jnp.asarray(budget, dtype=vt.dtype).reshape((1,))

    n = B * C * K
    cost = pl.CostEstimate(
        flops=9 * n,                       # sub, square, reduce, scale, add
        transcendentals=2 * B * K,         # sqrt + reciprocal per point
        bytes_accessed=3 * n * vt.dtype.itemsize,
    )

    return pl.pallas_call(
        _clip_linf_kernel,
        out_shape=jax.ShapeDtypeStruct((B, C, K), vt.dtype),
        grid_spec=pltpu.PrefetchScalarGridSpec(
            num_scalar_prefetch=0,
            grid=grid,
            in_specs=[
                pl.BlockSpec(memory_space=pltpu.MemorySpace.SMEM),   # budget
                pl.BlockSpec((Bt, C, Kt), lambda b, k: (b, 0, k)),   # vt
                pl.BlockSpec((Bt, C, Kt), lambda b, k: (b, 0, k)),   # ori_vt
            ],
            out_specs=pl.BlockSpec((Bt, C, Kt), lambda b, k: (b, 0, k)),
        ),
        compiler_params=pltpu.CompilerParams(
            dimension_semantics=("parallel", "parallel"),
        ),
        cost_estimate=cost,
        # Optionally reuse vt's HBM buffer for the output (large meshes).
        input_output_aliases={1: 0} if donate_vt else {},
    )(budget_arr, vt, ori_vt)


def clip_mesh_linf_ref(vt, ori_vt, budget):
    """Pure-JAX reference mirroring the PyTorch forward."""
    diff = vt - ori_vt
    norm = jnp.sum(diff ** 2, axis=1) ** 0.5
    scale = jnp.minimum(budget / (norm + 1e-9), 1.0)
    return ori_vt + diff * scale[:, None]


if __name__ == "__main__":
    budget = 0.1

    def check(B, K, key):
        k1, k2 = jax.random.split(key)
        ori = jax.random.normal(k1, (B, 3, K), dtype=jnp.float32)
        vt = ori + 0.5 * jax.random.normal(k2, (B, 3, K), dtype=jnp.float32)
        out = jax.block_until_ready(clip_mesh_linf(vt, ori, budget))
        ref = clip_mesh_linf_ref(vt, ori, budget)
        assert out.shape == ref.shape
        assert jnp.allclose(out, ref, atol=1e-5, rtol=1e-5), f"mismatch B={B} K={K}"

    keys = jax.random.split(jax.random.PRNGKey(0), 3)
    check(2, 256, keys[0])   # 128-aligned K, two batch blocks (>=2 for v7x)
    check(2, 200, keys[1])   # non-128-aligned K (full-dim lane block, no padding)
    check(9, 384, keys[2])   # partial trailing batch block (Bt=5 over B=9)

    print("KERNEL_OK")
</pallas_src>

<mosaic_0001>
module attributes {stable_mosaic.version = 11 : i64} {
  func.func @_clip_linf_kernel(%arg0: i32, %arg1: i32, %arg2: memref<1xf32, #tpu.memory_space<smem>>, %arg3: memref<1x3x256xf32, #tpu.memory_space<vmem>>, %arg4: memref<1x3x256xf32, #tpu.memory_space<vmem>>, %arg5: memref<1x3x256xf32, #tpu.memory_space<vmem>>) attributes {dimension_semantics = [#tpu.dimension_semantics<parallel>, #tpu.dimension_semantics<parallel>], iteration_bounds = array<i64: 2, 1>, scalar_prefetch = 0 : i64, scratch_operands = 0 : i64, tpu.core_type = #tpu.core_type<tc>, window_params = [{transform_indices = @transform_0, window_bounds = array<i64: 1>}, {transform_indices = @transform_1, window_bounds = array<i64: 1, 3, 256>}, {transform_indices = @transform_2, window_bounds = array<i64: 1, 3, 256>}, {transform_indices = @transform_3, window_bounds = array<i64: 1, 3, 256>}]} {
    %c0 = arith.constant 0 : index
    %0 = memref.load %arg2[%c0] : memref<1xf32, #tpu.memory_space<smem>>
    %c0_0 = arith.constant 0 : index
    %c0_1 = arith.constant 0 : index
    %c0_2 = arith.constant 0 : index
    %1 = vector.load %arg3[%c0_0, %c0_1, %c0_2] : memref<1x3x256xf32, #tpu.memory_space<vmem>>, vector<1x3x256xf32>
    %c0_3 = arith.constant 0 : index
    %c0_4 = arith.constant 0 : index
    %c0_5 = arith.constant 0 : index
    %2 = vector.load %arg4[%c0_3, %c0_4, %c0_5] : memref<1x3x256xf32, #tpu.memory_space<vmem>>, vector<1x3x256xf32>
    %3 = arith.subf %1, %2 : vector<1x3x256xf32>
    %4 = arith.mulf %3, %3 : vector<1x3x256xf32>
    %cst = arith.constant dense<0.000000e+00> : vector<1x256xf32>
    %5 = vector.multi_reduction <add>, %4, %cst [1] : vector<1x3x256xf32> to vector<1x256xf32>
    %6 = vector.shape_cast %5 : vector<1x256xf32> to vector<1x1x256xf32>
    %7 = math.sqrt %6 : vector<1x1x256xf32>
    %cst_6 = arith.constant 9.99999971E-10 : f32
    %8 = vector.broadcast %cst_6 : f32 to vector<1x1x256xf32>
    %9 = arith.addf %7, %8 : vector<1x1x256xf32>
    %10 = vector.broadcast %0 : f32 to vector<1x1x256xf32>
    %11 = arith.divf %10, %9 : vector<1x1x256xf32>
    %cst_7 = arith.constant 1.000000e+00 : f32
    %12 = vector.broadcast %cst_7 : f32 to vector<1x1x256xf32>
    %13 = arith.minimumf %11, %12 : vector<1x1x256xf32>
    %14 = vector.broadcast %13 : vector<1x1x256xf32> to vector<1x3x256xf32>
    %15 = arith.mulf %3, %14 : vector<1x3x256xf32>
    %16 = arith.addf %2, %15 : vector<1x3x256xf32>
    %c0_8 = arith.constant 0 : index
    %c0_9 = arith.constant 0 : index
    %c0_10 = arith.constant 0 : index
    %17 = vector.load %arg5[%c0_8, %c0_9, %c0_10] : memref<1x3x256xf32, #tpu.memory_space<vmem>>, vector<1x3x256xf32>
    tpu.vector_store %arg5[%c0_8, %c0_9, %c0_10], %16 {strides = array<i32>} : memref<1x3x256xf32, #tpu.memory_space<vmem>>, vector<1x3x256xf32>,
    return
  }
  func.func @transform_0(%arg0: i32, %arg1: i32) -> i32 {
    %c0_i32 = arith.constant 0 : i32
    %c0_i32_0 = arith.constant 0 : i32
    return %c0_i32 : i32
  }
  func.func @transform_1(%arg0: i32, %arg1: i32) -> (i32, i32, i32) {
    %c0_i32 = arith.constant 0 : i32
    %c0_i32_0 = arith.constant 0 : i32
    return %arg0, %c0_i32, %arg1 : i32, i32, i32
  }
  func.func @transform_2(%arg0: i32, %arg1: i32) -> (i32, i32, i32) {
    %c0_i32 = arith.constant 0 : i32
    %c0_i32_0 = arith.constant 0 : i32
    return %arg0, %c0_i32, %arg1 : i32, i32, i32
  }
  func.func @transform_3(%arg0: i32, %arg1: i32) -> (i32, i32, i32) {
    %c0_i32 = arith.constant 0 : i32
    %c0_i32_0 = arith.constant 0 : i32
    return %arg0, %c0_i32, %arg1 : i32, i32, i32
  }
}

</mosaic_0001>

<llo_original>
// kernel: tpu_custom_call.1
$region0: #{tpu_custom_call.1}
  #allocation0 [shape = 'u32[]', space=smem, size = 0x4, offset = 0x4, fixed_abs, tag = 'smem constant byte address 0x4 - core index']
  #allocation1 [shape = 'u32[144,128]{1,0:T(1,128)}', space=vmem, size = 0x12000, scoped, tag = 'internal scratch']
  #allocation2 [shape = 'f32[1]{0:T(128)S(6)}', space=smem, size = 0x200, scoped, tag = 'scoped memory for tpu_custom_call.1']
  %s0 = inlined_call_operand.<no memory space> [shape: f32[1], index: 0, kind: input, shape index: {}]
  %s1 = inlined_call_operand.vmem [shape: f32[2,3,256], index: 1, kind: input, shape index: {}]
  %s2 = inlined_call_operand.vmem [shape: f32[2,3,256], index: 2, kind: input, shape index: {}]
  %s3 = inlined_call_operand.vmem [shape: f32[2,3,256], index: 3, kind: output, shape index: {}]
  %s4 = sld [smem:[#allocation0]]
  $region45: #{tpu_custom_call.1} parent=0
    _
  %s6 = ssub.s32 1, %s4
  %s7 = scalar_select 0, %s6, %s4
  %8 = sst [smem:[#allocation2]] %s0
  loop: start=0, step=1, limit=4
  $region2: #{tpu_custom_call.1} parent=0 // loop_pre_header
    _
  $region3: #{tpu_custom_call.1} parent=0 // loop_header
    %s10 = sphi 0, %s14
    %p11 = scmp.ge.s32.totalorder %s10, 4
    %s17 = sphi 0, %s29
    %s18 = sphi 0, %s25
    %s19 = sphi 0, %s17
    %s20 = sphi 0, %s18
    %s21 = sphi 0, %s19
    %s22 = sphi 0, %s20
    %s30 = sphi 0, %s30
    %s32 = sphi 0, %s30
    %s33 = sphi 0, %s32
    %s47 = sphi 0, %s33
    %s55 = sphi 0, %s57
    %s58 = sphi 0, %s55
    %s59 = sphi 0, %s58
    %s75 = sphi 0, %s59
    %s83 = sphi 0, %s85
    %s86 = sphi 0, %s83
    %s87 = sphi 0, %s86
    %s103 = sphi 0, %s87
    %s111 = sphi 0, %s113
    %s114 = sphi 0, %s111
    %s115 = sphi 0, %s114
    %s131 = sphi 0, %s115
  $region4: #{tpu_custom_call.1} parent=0 // loop_header_branch
    %13 = sbr.rel (%p11) target = $region8
  $region5: #{tpu_custom_call.1} parent=0 // loop_body
    %s15 = ssub.s32 %s10, 1
    %s16 = ssub.s32 %s10, 2
    %s23 = sadd.s32 1, %s18
    %p24 = scmp.ge.s32.totalorder %s23, 1
    %s25 = scalar_select %p24, 0, %s23
    %s26 = sadd.s32 1, %s17
    %s27 = scalar_select %p24, %s26, %s17
    %p28 = scmp.ge.s32.totalorder %s27, 2
    %s29 = scalar_select %p28, 0, %s27
    %s31 = sadd.s32 %s30, 1
    %p34 = scmp.eq.s32.totalorder %s10, 1
    %p35 = scmp.ne.s32.totalorder %s30, %s32
    %p36 = scmp.eq.s32.totalorder %s10, 0
    %p37 = por %p35, %p36
    %p38 = scmp.ne.s32.totalorder %s30, %s32
    %p39 = scmp.eq.s32.totalorder %s15, 1
    %p40 = por %p38, %p39
    %p41 = scmp.ne.s32.totalorder %s32, %s33
    %p42 = scmp.eq.s32.totalorder %s15, 0
    %p43 = por %p41, %p42
    %p44 = scmp.ne.s32.totalorder %s32, %s33
    %p45 = scmp.eq.s32.totalorder %s16, 1
    %p46 = por %p44, %p45
    %p48 = scmp.ne.s32.totalorder %s33, %s47
    %p49 = scmp.eq.s32.totalorder %s16, 0
    %p50 = por %p48, %p49
    %s51 = ssub.s32 %s17, %s29
    %s52 = ssub.s32 %s18, %s25
    %s53 = sor.u32 %s51, %s52
    %p54 = scmp.eq.s32.totalorder %s53, 0
    %s56 = sadd.s32 %s55, 1
    %s57 = scalar_select %p54, %s55, %s56
    %p60 = pneg %p54
    %p61 = scmp.eq.s32.totalorder %s10, 1
    %p62 = por %p60, %p61
    %p63 = scmp.ne.s32.totalorder %s55, %s58
    %p64 = scmp.eq.s32.totalorder %s10, 0
    %p65 = por %p63, %p64
    %p66 = scmp.ne.s32.totalorder %s55, %s58
    %p67 = scmp.eq.s32.totalorder %s15, 1
    %p68 = por %p66, %p67
    %p69 = scmp.ne.s32.totalorder %s58, %s59
    %p70 = scmp.eq.s32.totalorder %s15, 0
    %p71 = por %p69, %p70
    %p72 = scmp.ne.s32.totalorder %s58, %s59
    %p73 = scmp.eq.s32.totalorder %s16, 1
    %p74 = por %p72, %p73
    %p76 = scmp.ne.s32.totalorder %s59, %s75
    %p77 = scmp.eq.s32.totalorder %s16, 0
    %p78 = por %p76, %p77
    %s79 = ssub.s32 %s17, %s29
    %s80 = ssub.s32 %s18, %s25
    %s81 = sor.u32 %s79, %s80
    %p82 = scmp.eq.s32.totalorder %s81, 0
    %s84 = sadd.s32 %s83, 1
    %s85 = scalar_select %p82, %s83, %s84
    %p88 = pneg %p82
    %p89 = scmp.eq.s32.totalorder %s10, 1
    %p90 = por %p88, %p89
    %p91 = scmp.ne.s32.totalorder %s83, %s86
    %p92 = scmp.eq.s32.totalorder %s10, 0
    %p93 = por %p91, %p92
    %p94 = scmp.ne.s32.totalorder %s83, %s86
    %p95 = scmp.eq.s32.totalorder %s15, 1
    %p96 = por %p94, %p95
    %p97 = scmp.ne.s32.totalorder %s86, %s87
    %p98 = scmp.eq.s32.totalorder %s15, 0
    %p99 = por %p97, %p98
    %p100 = scmp.ne.s32.totalorder %s86, %s87
    %p101 = scmp.eq.s32.totalorder %s16, 1
    %p102 = por %p100, %p101
    %p104 = scmp.ne.s32.totalorder %s87, %s103
    %p105 = scmp.eq.s32.totalorder %s16, 0
    %p106 = por %p104, %p105
    %s107 = ssub.s32 %s17, %s29
    %s108 = ssub.s32 %s18, %s25
    %s109 = sor.u32 %s107, %s108
    %p110 = scmp.eq.s32.totalorder %s109, 0
    %s112 = sadd.s32 %s111, 1
    %s113 = scalar_select %p110, %s111, %s112
    %p116 = pneg %p110
    %p117 = scmp.eq.s32.totalorder %s10, 1
    %p118 = por %p116, %p117
    %p119 = scmp.ne.s32.totalorder %s111, %s114
    %p120 = scmp.eq.s32.totalorder %s10, 0
    %p121 = por %p119, %p120
    %p122 = scmp.ne.s32.totalorder %s111, %s114
    %p123 = scmp.eq.s32.totalorder %s15, 1
    %p124 = por %p122, %p123
    %p125 = scmp.ne.s32.totalorder %s114, %s115
    %p126 = scmp.eq.s32.totalorder %s15, 0
    %p127 = por %p125, %p126
    %p128 = scmp.ne.s32.totalorder %s114, %s115
    %p129 = scmp.eq.s32.totalorder %s16, 1
    %p130 = por %p128, %p129
    %p132 = scmp.ne.s32.totalorder %s115, %s131
    %p133 = scmp.eq.s32.totalorder %s16, 0
    %p134 = por %p132, %p133
    %p135 = scmp.le.s32.totalorder 1, %s10
    %p136 = scmp.lt.s32.totalorder %s10, 3
    %p137 = pnand %p135, %p136
    %p138 = pneg %p137
    // Predicated region
    $region9: #{tpu_custom_call.1} parent=5 // pred_check
      _
    $region10: #{tpu_custom_call.1} parent=5 // pred_check_branch
      %140 = sbr.rel (%p137) target = $region12
    $region11: #{tpu_custom_call.1} parent=5 // pred_region
      %s141 = ssub.s32 %s10, 1
      // Predicated region
      $region13: #{tpu_custom_call.1} parent=11 // pred_check
        %p142 = pneg %p43
      $region14: #{tpu_custom_call.1} parent=11 // pred_check_branch
        %144 = sbr.rel (%p142) target = $region16
      $region15: #{tpu_custom_call.1} parent=11 // pred_region
        _
      $region16: #{tpu_custom_call.1} parent=11 // pred_fallthru
        _
    $region12: #{tpu_custom_call.1} parent=5 // pred_fallthru
      _
    %p145 = scmp.lt.s32.totalorder %s10, 2
    // Predicated region
    $region17: #{tpu_custom_call.1} parent=5 // pred_check
      %p146 = pneg %p145
    $region18: #{tpu_custom_call.1} parent=5 // pred_check_branch
      %148 = sbr.rel (%p146) target = $region20
    $region19: #{tpu_custom_call.1} parent=5 // pred_region
      // Predicated region
      $region21: #{tpu_custom_call.1} parent=19 // pred_check
        %p149 = pneg %p65
      $region22: #{tpu_custom_call.1} parent=19 // pred_check_branch
        %151 = sbr.rel (%p149) target = $region24
      $region23: #{tpu_custom_call.1} parent=19 // pred_region
        %s152 = smul.u32 2, %s18
        %p153 = scmp.lt.s32.totalorder %s17, 1
        %s154 = scalar_select %p153, %s17, 1
        %p155 = scmp.lt.s32.totalorder %s152, 1
        %s156 = scalar_select %p155, %s152, 1
        %s157 = smul.addr %s154, 2
        %s158 = sadd.s32 %s156, %s157
        %s159 = smul.addr %s158, 4
        %s160 = scalar_lea.vmem %s1, %s159
        %s161 = smul.u32 2, %s18
      $region24: #{tpu_custom_call.1} parent=19 // pred_fallthru
        _
      // Predicated region
      $region25: #{tpu_custom_call.1} parent=19 // pred_check
        %p162 = pneg %p93
      $region26: #{tpu_custom_call.1} parent=19 // pred_check_branch
        %164 = sbr.rel (%p162) target = $region28
      $region27: #{tpu_custom_call.1} parent=19 // pred_region
        %s165 = smul.u32 2, %s18
        %p166 = scmp.lt.s32.totalorder %s17, 1
        %s167 = scalar_select %p166, %s17, 1
        %p168 = scmp.lt.s32.totalorder %s165, 1
        %s169 = scalar_select %p168, %s165, 1
        %s170 = smul.addr %s167, 2
        %s171 = sadd.s32 %s169, %s170
        %s172 = smul.addr %s171, 4
        %s173 = scalar_lea.vmem %s2, %s172
        %s174 = smul.u32 2, %s18
      $region28: #{tpu_custom_call.1} parent=19 // pred_fallthru
        _
    $region20: #{tpu_custom_call.1} parent=5 // pred_fallthru
      _
    %p175 = scmp.le.s32.totalorder 1, %s10
    %p176 = scmp.lt.s32.totalorder %s10, 3
    %p177 = pnand %p175, %p176
    %p178 = pneg %p177
    // Predicated region
    $region29: #{tpu_custom_call.1} parent=5 // pred_check
      _
    $region30: #{tpu_custom_call.1} parent=5 // pred_check_branch
      %180 = sbr.rel (%p177) target = $region32
    $region31: #{tpu_custom_call.1} parent=5 // pred_region
      %s181 = ssub.s32 %s10, 1
      %p182 = pneg %p43
      %p183 = pneg %p40
      %s184 = smul.u32 2, %s20
      %p185 = scmp.lt.s32.totalorder %s19, 1
      %s186 = scalar_select %p185, %s19, 1
      %p187 = scmp.lt.s32.totalorder %s184, 1
      %s188 = scalar_select %p187, %s184, 1
      %s189 = smul.addr %s186, 2
      %s190 = sadd.s32 %s188, %s189
      %s191 = smul.addr %s190, 4
      %s192 = scalar_lea.vmem %s1, %s191
      %p193 = pneg %p71
      %p194 = pneg %p68
      %s195 = smul.u32 2, %s20
      %p196 = scmp.lt.s32.totalorder %s19, 1
      %s197 = scalar_select %p196, %s19, 1
      %p198 = scmp.lt.s32.totalorder %s195, 1
      %s199 = scalar_select %p198, %s195, 1
      %s200 = smul.addr %s197, 2
      %s201 = sadd.s32 %s199, %s200
      %s202 = smul.addr %s201, 4
      %s203 = scalar_lea.vmem %s2, %s202
      %p204 = pneg %p99
      %p205 = pneg %p96
      %p206 = pneg %p127
      %p207 = pneg %p124
      %s208 = smul.u32 2, %s20
      %p209 = scmp.lt.s32.totalorder %s19, 1
      %s210 = scalar_select %p209, %s19, 1
      %p211 = scmp.lt.s32.totalorder %s208, 1
      %s212 = scalar_select %p211, %s208, 1
      %s213 = smul.addr %s210, 2
      %s214 = sadd.s32 %s212, %s213
      %s215 = smul.addr %s214, 4
      %s216 = scalar_lea.vmem %s3, %s215
      %s217 = smul.u32 2, %s20
      %p218 = scmp.lt.s32.totalorder %s19, 1
      %s219 = scalar_select %p218, %s19, 1
      %p220 = scmp.lt.s32.totalorder %s217, 1
      %s221 = scalar_select %p220, %s217, 1
      %s222 = smul.addr %s219, 2
      %s223 = sadd.s32 %s221, %s222
      %s224 = smul.addr %s223, 4
      %s225 = scalar_lea.vmem %s1, %s224
      %s226 = smul.u32 2, %s20
      %s227 = smul.u32 2, %s20
      %p228 = scmp.lt.s32.totalorder %s19, 1
      %s229 = scalar_select %p228, %s19, 1
      %p230 = scmp.lt.s32.totalorder %s227, 1
      %s231 = scalar_select %p230, %s227, 1
      %s232 = smul.addr %s229, 2
      %s233 = sadd.s32 %s231, %s232
      %s234 = smul.addr %s233, 4
      %s235 = scalar_lea.vmem %s2, %s234
      %s236 = smul.u32 2, %s20
      %s237 = smul.u32 2, %s20
      %p238 = scmp.lt.s32.totalorder %s19, 1
      %s239 = scalar_select %p238, %s19, 1
      %p240 = scmp.lt.s32.totalorder %s237, 1
      %s241 = scalar_select %p240, %s237, 1
      %s242 = smul.addr %s239, 2
      %s243 = sadd.s32 %s241, %s242
      %s244 = smul.addr %s243, 4
      %s245 = scalar_lea.vmem %s3, %s244
      %s246 = smul.u32 2, %s20
      %s247 = sld [smem:[#allocation2]]
      %v248 = vld [vmem:[%s225] sm:$0x77]
      %v249 = vld [vmem:[%s235] sm:$0x77]
      %v250 = vsub.f32 %v248, %v249
      %v251 = vmul.f32 %v250, %v250
      %v253 = vcombine.high %v251, %v251
      %vm255 = vcmask 1042432
      %v256 = vsel %vm255, %v251, 0.0
      %v257 = vrot.slane %v256, 4
      %v258 = vadd.f32 %v256, %v257
      %v259 = vrot.slane %v258, 2
      %v260 = vadd.f32 %v258, %v259
      %v261 = vrot.slane %v260, 1
      %v262 = vadd.f32 %v260, %v261
      %v263 = vsel %vm255, %v253, 0.0
      %v264 = vrot.slane %v263, 4
      %v265 = vadd.f32 %v263, %v264
      %v266 = vrot.slane %v265, 2
      %v267 = vadd.f32 %v265, %v266
      %v268 = vrot.slane %v267, 1
      %v269 = vadd.f32 %v267, %v268
      %v270 = vrsqrt.pop %v262
      %v271 = vmul.f32 %v262, %v270
      %vm272 = vcmp.eq.f32.partialorder %v262, inf
      %v273 = vsel %vm272, %v262, %v271
      %vm274 = vcmp.eq.f32.partialorder %v262, 0.0
      %v275 = vand.u32 %v262, 2147483648
      %v276 = vsel %vm274, %v275, %v273
      %v277 = vrsqrt.pop %v269
      %v278 = vmul.f32 %v269, %v277
      %vm279 = vcmp.eq.f32.partialorder %v269, inf
      %v280 = vsel %vm279, %v269, %v278
      %vm281 = vcmp.eq.f32.partialorder %v269, 0.0
      %v282 = vand.u32 %v269, 2147483648
      %v283 = vsel %vm281, %v282, %v280
      %v284 = vadd.f32 %v276, 1e-09
      %v285 = vadd.f32 %v283, 1e-09
      %v286 = vstv %s247
      %v287 = vrcp.pop %v284
      %v288 = vmul.f32 %v286, %v287
      %v289 = vrcp.pop %v285
      %v290 = vmul.f32 %v286, %v289
      %v291 = vmin.f32 %v288, 1.0
      %v292 = vmin.f32 %v290, 1.0
      %v295 = vcombine.low %v291, %v292
      %v297 = vmul.f32 %v250, %v295
      %v298 = vadd.f32 %v249, %v297
      %299 = vst [vmem:[%s245] sm:$0x77] %v298
      %s300 = smul.u32 2, %s20
      %p301 = scmp.lt.s32.totalorder %s19, 1
      %s302 = scalar_select %p301, %s19, 1
      %p303 = scmp.lt.s32.totalorder %s300, 1
      %s304 = scalar_select %p303, %s300, 1
      %s305 = smul.addr %s302, 2
      %s306 = sadd.s32 %s304, %s305
      %s307 = smul.addr %s306, 4
      %s308 = scalar_lea.vmem %s3, %s307
      // Predicated region
      $region33: #{tpu_custom_call.1} parent=31 // pred_check
        %p309 = pneg %p124
      $region34: #{tpu_custom_call.1} parent=31 // pred_check_branch
        %311 = sbr.rel (%p309) target = $region36
      $region35: #{tpu_custom_call.1} parent=31 // pred_region
        %s312 = smul.u32 2, %s20
      $region36: #{tpu_custom_call.1} parent=31 // pred_fallthru
        _
    $region32: #{tpu_custom_call.1} parent=5 // pred_fallthru
      _
    %p313 = scmp.le.s32.totalorder 2, %s10
    // Predicated region
    $region37: #{tpu_custom_call.1} parent=5 // pred_check
      %p314 = pneg %p313
    $region38: #{tpu_custom_call.1} parent=5 // pred_check_branch
      %316 = sbr.rel (%p314) target = $region40
    $region39: #{tpu_custom_call.1} parent=5 // pred_region
      %s317 = ssub.s32 %s10, 2
      // Predicated region
      $region41: #{tpu_custom_call.1} parent=39 // pred_check
        %p318 = pneg %p130
      $region42: #{tpu_custom_call.1} parent=39 // pred_check_branch
        %320 = sbr.rel (%p318) target = $region44
      $region43: #{tpu_custom_call.1} parent=39 // pred_region
        %s321 = smul.u32 2, %s22
        %p322 = scmp.lt.s32.totalorder %s21, 1
        %s323 = scalar_select %p322, %s21, 1
        %p324 = scmp.lt.s32.totalorder %s321, 1
        %s325 = scalar_select %p324, %s321, 1
        %s326 = smul.addr %s323, 2
        %s327 = sadd.s32 %s325, %s326
        %s328 = smul.addr %s327, 4
        %s329 = scalar_lea.vmem %s3, %s328
      $region44: #{tpu_custom_call.1} parent=39 // pred_fallthru
        _
    $region40: #{tpu_custom_call.1} parent=5 // pred_fallthru
      _
  $region6: #{tpu_custom_call.1} parent=0 // loop_footer
    %s14 = sadd.s32 1, %s10
  $region7: #{tpu_custom_call.1} parent=0 // loop_footer_branch
    %9 = sbr.rel target = $region3
  $region8: #{tpu_custom_call.1} parent=0 // loop_exit
    _

</llo_original>
